<compile_context>
chip_gen: v6e
topology: v6e:2x2x1
jax: 0.10.0
libtpu: 0.0.40
codegen_flags: <defaults>
</compile_context>

<pallas_src>
import jax
import jax.numpy as jnp
from jax.experimental import pallas as pl
from jax.experimental.pallas import tpu as pltpu


def _linear_transform_kernel(x_ref, w_ref, b_ref, o_ref):
    # Dropout is identity in eval mode; fuse the first Tanh on the input tile.
    # Cast to bf16 for the MXU; accumulate in f32.
    xt = jnp.tanh(x_ref[...]).astype(jnp.bfloat16)
    y = jnp.dot(xt, w_ref[...], preferred_element_type=jnp.float32)
    # Fused bias add + final tanh epilogue, written straight to the output tile.
    o_ref[...] = jnp.tanh(y + b_ref[...]).astype(o_ref.dtype)


def _num_tensorcores():
    """Best-effort TensorCore count (2 on v7x, 1 on v5e/v6e). Fail-safe to 1."""
    try:
        dev = jax.devices()[0]
        n = getattr(dev, "num_cores", None)
        if n:
            return int(n)
    except Exception:
        pass
    try:
        info = pltpu.get_tpu_info()
        n = getattr(info, "num_cores", None)
        if n:
            return int(n)
    except Exception:
        pass
    return 1


def _vmem_capacity_bytes():
    """Physical VMEM per TensorCore (128 MiB on v5e/v6e, 64 MiB on v7x)."""
    try:
        return int(pltpu.get_tpu_info().vmem_capacity_bytes)
    except Exception:
        return 128 * 1024 * 1024  # conservative-side default for the cap below


def _pick_tm(B):
    # Single block for small/medium batches; large batches use the biggest
    # MXU-friendly tile dividing B (fewer grid steps -> less per-step overhead).
    if B <= 1024:
        return B
    for cand in (1024, 512, 256, 128):
        if B % cand == 0:
            return cand
    return B  # ragged large batch: fall back to a single block


def linear_transform_forward(x, w_t, b, *, tm=None, n_splits=None, out_dtype=None):
    """x: (B, D) f32, w_t: (D, N) f32 (PyTorch weight transposed), b: (N,) f32.

    out_dtype: optional output dtype (e.g. jnp.bfloat16 to halve output HBM
    traffic at large B). Defaults to x.dtype (f32) to keep the interface.
    """
    B, D = x.shape
    D2, N = w_t.shape
    assert D == D2, "weight / input feature mismatch"
    out_dtype = jnp.dtype(out_dtype) if out_dtype is not None else x.dtype

    if tm is None:
        tm = _pick_tm(B)
    assert B % tm == 0, "pad B to a multiple of tm (ragged batch not handled)"
    batch_blocks = B // tm

    if n_splits is None:
        # Default: no N split. Only split the 1024-wide output when the batch
        # axis cannot feed a second TensorCore (v7x). On 1-TC v5e/v6e a split
        # would just re-read x, re-run tanh(x), and add a grid step.
        # (For tiny B on v7x this is still worth benchmarking against
        #  n_splits=1 — the kernel is DMA-latency/overhead bound there.)
        if batch_blocks >= 2:
            n_splits = 1
        elif _num_tensorcores() >= 2 and N % 256 == 0:
            n_splits = 2
        else:
            n_splits = 1
    assert N % n_splits == 0
    tn = N // n_splits
    assert tn % 128 == 0, "output split must stay lane-dense (multiple of 128)"

    # Pre-cast W to bf16 in the wrapper (halves W HBM traffic; MXU-native dtype).
    w_bf16 = w_t.astype(jnp.bfloat16)
    b2 = b.reshape(1, N).astype(jnp.float32)  # keep bias 2-D: block (1, tn)

    # --- VMEM budget (per generation) -------------------------------------
    # Resident W slab + double-buffered x / out tiles must fit the chip's VMEM:
    # v5e/v6e have 128 MiB physical, v7x only 64 MiB. We cap the scoped limit
    # at ~75% of physical and assert the footprint fits; if D (and hence the
    # W slab) grows past this budget, reintroduce a K split with an f32
    # accumulator instead of raising the limit further (esp. on v7x).
    x_tile_bytes = 2 * tm * D * x.dtype.itemsize            # double-buffered
    w_tile_bytes = 2 * D * tn * w_bf16.dtype.itemsize        # default 2 buffers
    b_tile_bytes = 2 * tn * 4
    o_tile_bytes = 2 * tm * tn * out_dtype.itemsize          # double-buffered
    footprint = x_tile_bytes + w_tile_bytes + b_tile_bytes + o_tile_bytes
    vmem_cap = (_vmem_capacity_bytes() * 3) // 4
    vmem_limit = min(max(32 * 1024 * 1024, footprint + (4 << 20)), vmem_cap)
    assert footprint <= vmem_limit, (
        "tile footprint exceeds VMEM budget: shrink tm or reintroduce a K split"
    )

    out_bytes = B * N * out_dtype.itemsize
    cost = pl.CostEstimate(
        flops=2 * B * D * N,
        transcendentals=B * D * n_splits + B * N,  # tanh(x) per split + output tanh
        bytes_accessed=(x.size * x.dtype.itemsize * n_splits   # x re-read per split
                        + w_bf16.size * w_bf16.dtype.itemsize
                        + b2.size * 4 + out_bytes),
    )

    # Grid: (N-split, batch-block).  N-split is outermost so the W block index is
    # constant across the inner batch loop -> W stays resident in VMEM (no re-DMA
    # per batch block).  Both axes are independent -> "parallel" (megacore / v7x).
    grid = (n_splits, batch_blocks)

    return pl.pallas_call(
        _linear_transform_kernel,
        out_shape=jax.ShapeDtypeStruct((B, N), out_dtype),
        grid_spec=pltpu.PrefetchScalarGridSpec(
            num_scalar_prefetch=0,
            grid=grid,
            in_specs=[
                pl.BlockSpec((tm, D), lambda j, i: (i, 0)),   # x tile (full D)
                pl.BlockSpec((D, tn), lambda j, i: (0, j)),   # W slab, resident over i
                pl.BlockSpec((1, tn), lambda j, i: (0, j)),   # bias slab
            ],
            out_specs=pl.BlockSpec((tm, tn), lambda j, i: (i, j)),
        ),
        compiler_params=pltpu.CompilerParams(
            dimension_semantics=("parallel", "parallel"),
            vmem_limit_bytes=int(vmem_limit),
        ),
        cost_estimate=cost,
    )(x, w_bf16, b2)


def init_params(key, input_size, output_size=1024):
    """Deterministic parameter init matching the PyTorch module's __init__."""
    kw, kb = jax.random.split(key)
    # xavier_uniform_ on weight of shape (out, in): limit = sqrt(6/(fan_in+fan_out))
    limit = (6.0 / (input_size + output_size)) ** 0.5
    w = jax.random.uniform(
        kw, (output_size, input_size), jnp.float32, minval=-limit, maxval=limit
    )
    # PyTorch Linear default bias init: U(-1/sqrt(fan_in), 1/sqrt(fan_in))
    bound = 1.0 / (input_size ** 0.5)
    b = jax.random.uniform(
        kb, (output_size,), jnp.float32, minval=-bound, maxval=bound
    )
    return w, b


if __name__ == "__main__":
    key = jax.random.PRNGKey(0)
    k_x, k_p = jax.random.split(key)

    batch = 8
    input_size = 256

    x = jax.random.normal(k_x, (batch, input_size), jnp.float32)
    w, b = init_params(k_p, input_size)        # w: (1024, 256) like PyTorch
    w_t = jnp.transpose(w)                     # (256, 1024) for x @ W

    out = linear_transform_forward(x, w_t, b)
    out = jax.block_until_ready(out)

    # Pure-JAX f32 reference (dropout is identity in eval mode).
    # Tolerance loosened for the bf16 MXU inputs (f32 accumulation keeps the
    # error ~1e-3 for tanh-bounded activations; 3e-2 gives ample margin).
    ref = jnp.tanh(jnp.tanh(x) @ w_t + b[None, :])
    assert out.shape == (batch, 1024)
    assert jnp.allclose(out, ref, atol=3e-2, rtol=3e-2), "mismatch vs reference"

    print("KERNEL_OK")
</pallas_src>

<mosaic_0001>
module attributes {stable_mosaic.version = 11 : i64} {
  func.func @_linear_transform_kernel(%arg0: i32, %arg1: i32, %arg2: memref<8x256xf32, #tpu.memory_space<vmem>>, %arg3: memref<256x1024xbf16, #tpu.memory_space<vmem>>, %arg4: memref<1x1024xf32, #tpu.memory_space<vmem>>, %arg5: memref<8x1024xf32, #tpu.memory_space<vmem>>) attributes {dimension_semantics = [#tpu.dimension_semantics<parallel>, #tpu.dimension_semantics<parallel>], iteration_bounds = array<i64: 1, 1>, scalar_prefetch = 0 : i64, scratch_operands = 0 : i64, tpu.core_type = #tpu.core_type<tc>, window_params = [{transform_indices = @transform_0, window_bounds = array<i64: 8, 256>}, {transform_indices = @transform_1, window_bounds = array<i64: 256, 1024>}, {transform_indices = @transform_2, window_bounds = array<i64: 1, 1024>}, {transform_indices = @transform_3, window_bounds = array<i64: 8, 1024>}]} {
    %c0 = arith.constant 0 : index
    %c0_0 = arith.constant 0 : index
    %0 = vector.load %arg2[%c0, %c0_0] : memref<8x256xf32, #tpu.memory_space<vmem>>, vector<8x256xf32>
    %1 = math.tanh %0 : vector<8x256xf32>
    %2 = arith.truncf %1 : vector<8x256xf32> to vector<8x256xbf16>
    %c0_1 = arith.constant 0 : index
    %c0_2 = arith.constant 0 : index
    %3 = vector.load %arg3[%c0_1, %c0_2] : memref<256x1024xbf16, #tpu.memory_space<vmem>>, vector<256x1024xbf16>
    %cst = arith.constant dense<0.000000e+00> : vector<8x1024xf32>
    %4 = tpu.matmul %2, %3, %cst {dimension_numbers = #tpu.dot_dimension_numbers<[1], [0], [0], [1], [0, 0, 1, 1], [], []>} : vector<8x256xbf16>, vector<256x1024xbf16>, vector<8x1024xf32> -> vector<8x1024xf32>
    %c0_3 = arith.constant 0 : index
    %c0_4 = arith.constant 0 : index
    %5 = vector.load %arg4[%c0_3, %c0_4] : memref<1x1024xf32, #tpu.memory_space<vmem>>, vector<1x1024xf32>
    %6 = vector.broadcast %5 : vector<1x1024xf32> to vector<8x1024xf32>
    %7 = arith.addf %4, %6 : vector<8x1024xf32>
    %8 = math.tanh %7 : vector<8x1024xf32>
    %c0_5 = arith.constant 0 : index
    %c0_6 = arith.constant 0 : index
    %9 = vector.load %arg5[%c0_5, %c0_6] : memref<8x1024xf32, #tpu.memory_space<vmem>>, vector<8x1024xf32>
    tpu.vector_store %arg5[%c0_5, %c0_6], %8 {strides = array<i32>} : memref<8x1024xf32, #tpu.memory_space<vmem>>, vector<8x1024xf32>,
    return
  }
  func.func @transform_0(%arg0: i32, %arg1: i32) -> (i32, i32) {
    %c0_i32 = arith.constant 0 : i32
    %c0_i32_0 = arith.constant 0 : i32
    return %arg1, %c0_i32 : i32, i32
  }
  func.func @transform_1(%arg0: i32, %arg1: i32) -> (i32, i32) {
    %c0_i32 = arith.constant 0 : i32
    %c0_i32_0 = arith.constant 0 : i32
    return %c0_i32, %arg0 : i32, i32
  }
  func.func @transform_2(%arg0: i32, %arg1: i32) -> (i32, i32) {
    %c0_i32 = arith.constant 0 : i32
    %c0_i32_0 = arith.constant 0 : i32
    return %c0_i32, %arg0 : i32, i32
  }
  func.func @transform_3(%arg0: i32, %arg1: i32) -> (i32, i32) {
    %c0_i32 = arith.constant 0 : i32
    return %arg1, %arg0 : i32, i32
  }
}

</mosaic_0001>

<llo_original>
// kernel: tpu_custom_call.1
$region0: #{tpu_custom_call.1}
  #allocation0 [shape = 'u32[]', space=smem, size = 0x4, offset = 0x4, fixed_abs, tag = 'smem constant byte address 0x4 - core index']
  #allocation1 [shape = 'u32[144,128]{1,0:T(1,128)}', space=vmem, size = 0x12000, scoped, tag = 'internal scratch']
  %s0 = inlined_call_operand.hbm [shape: f32[8,256], index: 0, kind: input, shape index: {}]
  %s1 = inlined_call_operand.hbm [shape: bf16[256,1024], index: 1, kind: input, shape index: {}]
  %s2 = inlined_call_operand.hbm [shape: f32[1,1024], index: 2, kind: input, shape index: {}]
  %s3 = inlined_call_operand.hbm [shape: f32[8,1024], index: 3, kind: output, shape index: {}]
  %s4 = sld [smem:[#allocation0]]
  $region34: #{tpu_custom_call.1} parent=0
    _
  %s6 = ssub.s32 1, %s4
  %s7 = scalar_select 0, %s6, %s4
  $region1: #{tpu_custom_call.1} parent=0
    #allocation2 [shape = 'u8[8192]{0}', space=vmem, size = 0x2000, scoped, tag = 'input window, operand 0, single buffered']
    #allocation3 [shape = 's32[1]{0}', space=sflag, size = 0x4, scoped, tag = 'scoped memory for tpu_custom_call.1']
    #allocation4 [shape = 's32[1]{0}', space=sflag, size = 0x4, scoped, tag = 'scoped memory for tpu_custom_call.1']
    #allocation5 [shape = 'u8[524288]{0}', space=vmem, size = 0x80000, scoped, tag = 'input window, operand 1, single buffered']
    #allocation6 [shape = 's32[1]{0}', space=sflag, size = 0x4, scoped, tag = 'scoped memory for tpu_custom_call.1']
    #allocation7 [shape = 'u8[4096]{0}', space=vmem, size = 0x1000, scoped, tag = 'input window, operand 2, single buffered']
    #allocation8 [shape = 'u8[32768]{0}', space=vmem, size = 0x8000, scoped, tag = 'output window, operand 0, single buffered']
    %8 = vsyncpa [#allocation3], 0
    %9 = vsyncpa [#allocation6], 0
    %10 = vsyncpa [#allocation4], 0
    // Predicated region
    $region2: #{tpu_custom_call.1} parent=1 // pred_check
      _
    $region3: #{tpu_custom_call.1} parent=1 // pred_check_branch
      %12 = sbr.rel (0) target = $region5
    $region4: #{tpu_custom_call.1} parent=1 // pred_region
      %s14 = ssub.s32 256, 256
      %15 = vsyncadd [#allocation3], %s14
      %s17 = sshll.u32 [#allocation2], 4
      %s18 = int_to_ptr.vmem [resolvable:$true] %s17
      %20 = dma.hbm_to_vmem [thread:$0]  %s0, 256, %s18, [#allocation3]
    $region5: #{tpu_custom_call.1} parent=1 // pred_fallthru
      _
    // Predicated region
    $region6: #{tpu_custom_call.1} parent=1 // pred_check
      _
    $region7: #{tpu_custom_call.1} parent=1 // pred_check_branch
      %22 = sbr.rel (0) target = $region9
    $region8: #{tpu_custom_call.1} parent=1 // pred_region
      %s24 = ssub.s32 16384, 16384
      %25 = vsyncadd [#allocation6], %s24
      %s26 = sshll.u32 [#allocation5], 4
      %s27 = int_to_ptr.vmem [resolvable:$true] %s26
      %32 = dma.hbm_to_vmem [thread:$0]  %s1, 16384, %s27, [#allocation6], 512, 512, 32
    $region9: #{tpu_custom_call.1} parent=1 // pred_fallthru
      _
    // Predicated region
    $region10: #{tpu_custom_call.1} parent=1 // pred_check
      _
    $region11: #{tpu_custom_call.1} parent=1 // pred_check_branch
      %34 = sbr.rel (0) target = $region13
    $region12: #{tpu_custom_call.1} parent=1 // pred_region
      %s36 = ssub.s32 128, 128
      %37 = vsyncadd [#allocation6], %s36
      %s39 = sshll.u32 [#allocation7], 4
      %s40 = int_to_ptr.vmem [resolvable:$true] %s39
      %42 = dma.hbm_to_vmem [thread:$0]  %s2, 128, %s40, [#allocation6]
    $region13: #{tpu_custom_call.1} parent=1 // pred_fallthru
      _
    // Predicated region
    $region14: #{tpu_custom_call.1} parent=1 // pred_check
      _
    $region15: #{tpu_custom_call.1} parent=1 // pred_check_branch
      %44 = sbr.rel (0) target = $region17
    $region16: #{tpu_custom_call.1} parent=1 // pred_region
      %45 = dma.done [#allocation3], 256
    $region17: #{tpu_custom_call.1} parent=1 // pred_fallthru
      _
    // Predicated region
    $region18: #{tpu_custom_call.1} parent=1 // pred_check
      _
    $region19: #{tpu_custom_call.1} parent=1 // pred_check_branch
      %47 = sbr.rel (0) target = $region21
    $region20: #{tpu_custom_call.1} parent=1 // pred_region
      %48 = dma.done [#allocation6], 16384
    $region21: #{tpu_custom_call.1} parent=1 // pred_fallthru
      _
    // Predicated region
    $region22: #{tpu_custom_call.1} parent=1 // pred_check
      _
    $region23: #{tpu_custom_call.1} parent=1 // pred_check_branch
      %50 = sbr.rel (0) target = $region25
    $region24: #{tpu_custom_call.1} parent=1 // pred_region
      %51 = dma.done [#allocation6], 128
    $region25: #{tpu_custom_call.1} parent=1 // pred_fallthru
      _
    %v52 = vld [vmem:[#allocation2] sm:$0xff]
    %v53 = vld [vmem:[#allocation2 + $0x8] sm:$0xff]
    %v54 = vtanh.pop %v52
    %v55 = vtanh.pop %v53
    %v56 = vpack.c.bf16 %v54, %v54
    %v57 = vpack.c.bf16 %v55, %v55
    %v58 = vld [vmem:[#allocation5] sm:$0xff]
    %v59 = vld [vmem:[#allocation5 + $0x8] sm:$0xff]
    %v60 = vld [vmem:[#allocation5 + $0x10] sm:$0xff]
    %v61 = vld [vmem:[#allocation5 + $0x18] sm:$0xff]
    %v62 = vld [vmem:[#allocation5 + $0x20] sm:$0xff]
    %v63 = vld [vmem:[#allocation5 + $0x28] sm:$0xff]
    %v64 = vld [vmem:[#allocation5 + $0x30] sm:$0xff]
    %v65 = vld [vmem:[#allocation5 + $0x38] sm:$0xff]
    %v66 = vld [vmem:[#allocation5 + $0x40] sm:$0xff]
    %v67 = vld [vmem:[#allocation5 + $0x48] sm:$0xff]
    %v68 = vld [vmem:[#allocation5 + $0x50] sm:$0xff]
    %v69 = vld [vmem:[#allocation5 + $0x58] sm:$0xff]
    %v70 = vld [vmem:[#allocation5 + $0x60] sm:$0xff]
    %v71 = vld [vmem:[#allocation5 + $0x68] sm:$0xff]
    %v72 = vld [vmem:[#allocation5 + $0x70] sm:$0xff]
    %v73 = vld [vmem:[#allocation5 + $0x78] sm:$0xff]
    %v74 = vld [vmem:[#allocation5 + $0x80] sm:$0xff]
    %v75 = vld [vmem:[#allocation5 + $0x88] sm:$0xff]
    %v76 = vld [vmem:[#allocation5 + $0x90] sm:$0xff]
    %v77 = vld [vmem:[#allocation5 + $0x98] sm:$0xff]
    %v78 = vld [vmem:[#allocation5 + $0xa0] sm:$0xff]
    %v79 = vld [vmem:[#allocation5 + $0xa8] sm:$0xff]
    %v80 = vld [vmem:[#allocation5 + $0xb0] sm:$0xff]
    %v81 = vld [vmem:[#allocation5 + $0xb8] sm:$0xff]
    %v82 = vld [vmem:[#allocation5 + $0xc0] sm:$0xff]
    %v83 = vld [vmem:[#allocation5 + $0xc8] sm:$0xff]
    %v84 = vld [vmem:[#allocation5 + $0xd0] sm:$0xff]
    %v85 = vld [vmem:[#allocation5 + $0xd8] sm:$0xff]
    %v86 = vld [vmem:[#allocation5 + $0xe0] sm:$0xff]
    %v87 = vld [vmem:[#allocation5 + $0xe8] sm:$0xff]
    %v88 = vld [vmem:[#allocation5 + $0xf0] sm:$0xff]
    %v89 = vld [vmem:[#allocation5 + $0xf8] sm:$0xff]
    %v90 = vld [vmem:[#allocation5 + $0x100] sm:$0xff]
    %v91 = vld [vmem:[#allocation5 + $0x108] sm:$0xff]
    %v92 = vld [vmem:[#allocation5 + $0x110] sm:$0xff]
    %v93 = vld [vmem:[#allocation5 + $0x118] sm:$0xff]
    %v94 = vld [vmem:[#allocation5 + $0x120] sm:$0xff]
    %v95 = vld [vmem:[#allocation5 + $0x128] sm:$0xff]
    %v96 = vld [vmem:[#allocation5 + $0x130] sm:$0xff]
    %v97 = vld [vmem:[#allocation5 + $0x138] sm:$0xff]
    %v98 = vld [vmem:[#allocation5 + $0x140] sm:$0xff]
    %v99 = vld [vmem:[#allocation5 + $0x148] sm:$0xff]
    %v100 = vld [vmem:[#allocation5 + $0x150] sm:$0xff]
    %v101 = vld [vmem:[#allocation5 + $0x158] sm:$0xff]
    %v102 = vld [vmem:[#allocation5 + $0x160] sm:$0xff]
    %v103 = vld [vmem:[#allocation5 + $0x168] sm:$0xff]
    %v104 = vld [vmem:[#allocation5 + $0x170] sm:$0xff]
    %v105 = vld [vmem:[#allocation5 + $0x178] sm:$0xff]
    %v106 = vld [vmem:[#allocation5 + $0x180] sm:$0xff]
    %v107 = vld [vmem:[#allocation5 + $0x188] sm:$0xff]
    %v108 = vld [vmem:[#allocation5 + $0x190] sm:$0xff]
    %v109 = vld [vmem:[#allocation5 + $0x198] sm:$0xff]
    %v110 = vld [vmem:[#allocation5 + $0x1a0] sm:$0xff]
    %v111 = vld [vmem:[#allocation5 + $0x1a8] sm:$0xff]
    %v112 = vld [vmem:[#allocation5 + $0x1b0] sm:$0xff]
    %v113 = vld [vmem:[#allocation5 + $0x1b8] sm:$0xff]
    %v114 = vld [vmem:[#allocation5 + $0x1c0] sm:$0xff]
    %v115 = vld [vmem:[#allocation5 + $0x1c8] sm:$0xff]
    %v116 = vld [vmem:[#allocation5 + $0x1d0] sm:$0xff]
    %v117 = vld [vmem:[#allocation5 + $0x1d8] sm:$0xff]
    %v118 = vld [vmem:[#allocation5 + $0x1e0] sm:$0xff]
    %v119 = vld [vmem:[#allocation5 + $0x1e8] sm:$0xff]
    %v120 = vld [vmem:[#allocation5 + $0x1f0] sm:$0xff]
    %v121 = vld [vmem:[#allocation5 + $0x1f8] sm:$0xff]
    %v122 = vld [vmem:[#allocation5 + $0x200] sm:$0xff]
    %v123 = vld [vmem:[#allocation5 + $0x208] sm:$0xff]
    %v124 = vld [vmem:[#allocation5 + $0x210] sm:$0xff]
    %v125 = vld [vmem:[#allocation5 + $0x218] sm:$0xff]
    %v126 = vld [vmem:[#allocation5 + $0x220] sm:$0xff]
    %v127 = vld [vmem:[#allocation5 + $0x228] sm:$0xff]
    %v128 = vld [vmem:[#allocation5 + $0x230] sm:$0xff]
    %v129 = vld [vmem:[#allocation5 + $0x238] sm:$0xff]
    %v130 = vld [vmem:[#allocation5 + $0x240] sm:$0xff]
    %v131 = vld [vmem:[#allocation5 + $0x248] sm:$0xff]
    %v132 = vld [vmem:[#allocation5 + $0x250] sm:$0xff]
    %v133 = vld [vmem:[#allocation5 + $0x258] sm:$0xff]
    %v134 = vld [vmem:[#allocation5 + $0x260] sm:$0xff]
    %v135 = vld [vmem:[#allocation5 + $0x268] sm:$0xff]
    %v136 = vld [vmem:[#allocation5 + $0x270] sm:$0xff]
    %v137 = vld [vmem:[#allocation5 + $0x278] sm:$0xff]
    %v138 = vld [vmem:[#allocation5 + $0x280] sm:$0xff]
    %v139 = vld [vmem:[#allocation5 + $0x288] sm:$0xff]
    %v140 = vld [vmem:[#allocation5 + $0x290] sm:$0xff]
    %v141 = vld [vmem:[#allocation5 + $0x298] sm:$0xff]
    %v142 = vld [vmem:[#allocation5 + $0x2a0] sm:$0xff]
    %v143 = vld [vmem:[#allocation5 + $0x2a8] sm:$0xff]
    %v144 = vld [vmem:[#allocation5 + $0x2b0] sm:$0xff]
    %v145 = vld [vmem:[#allocation5 + $0x2b8] sm:$0xff]
    %v146 = vld [vmem:[#allocation5 + $0x2c0] sm:$0xff]
    %v147 = vld [vmem:[#allocation5 + $0x2c8] sm:$0xff]
    %v148 = vld [vmem:[#allocation5 + $0x2d0] sm:$0xff]
    %v149 = vld [vmem:[#allocation5 + $0x2d8] sm:$0xff]
    %v150 = vld [vmem:[#allocation5 + $0x2e0] sm:$0xff]
    %v151 = vld [vmem:[#allocation5 + $0x2e8] sm:$0xff]
    %v152 = vld [vmem:[#allocation5 + $0x2f0] sm:$0xff]
    %v153 = vld [vmem:[#allocation5 + $0x2f8] sm:$0xff]
    %v154 = vld [vmem:[#allocation5 + $0x300] sm:$0xff]
    %v155 = vld [vmem:[#allocation5 + $0x308] sm:$0xff]
    %v156 = vld [vmem:[#allocation5 + $0x310] sm:$0xff]
    %v157 = vld [vmem:[#allocation5 + $0x318] sm:$0xff]
    %v158 = vld [vmem:[#allocation5 + $0x320] sm:$0xff]
    %v159 = vld [vmem:[#allocation5 + $0x328] sm:$0xff]
    %v160 = vld [vmem:[#allocation5 + $0x330] sm:$0xff]
    %v161 = vld [vmem:[#allocation5 + $0x338] sm:$0xff]
    %v162 = vld [vmem:[#allocation5 + $0x340] sm:$0xff]
    %v163 = vld [vmem:[#allocation5 + $0x348] sm:$0xff]
    %v164 = vld [vmem:[#allocation5 + $0x350] sm:$0xff]
    %v165 = vld [vmem:[#allocation5 + $0x358] sm:$0xff]
    %v166 = vld [vmem:[#allocation5 + $0x360] sm:$0xff]
    %v167 = vld [vmem:[#allocation5 + $0x368] sm:$0xff]
    %v168 = vld [vmem:[#allocation5 + $0x370] sm:$0xff]
    %v169 = vld [vmem:[#allocation5 + $0x378] sm:$0xff]
    %v170 = vld [vmem:[#allocation5 + $0x380] sm:$0xff]
    %v171 = vld [vmem:[#allocation5 + $0x388] sm:$0xff]
    %v172 = vld [vmem:[#allocation5 + $0x390] sm:$0xff]
    %v173 = vld [vmem:[#allocation5 + $0x398] sm:$0xff]
    %v174 = vld [vmem:[#allocation5 + $0x3a0] sm:$0xff]
    %v175 = vld [vmem:[#allocation5 + $0x3a8] sm:$0xff]
    %v176 = vld [vmem:[#allocation5 + $0x3b0] sm:$0xff]
    %v177 = vld [vmem:[#allocation5 + $0x3b8] sm:$0xff]
    %v178 = vld [vmem:[#allocation5 + $0x3c0] sm:$0xff]
    %v179 = vld [vmem:[#allocation5 + $0x3c8] sm:$0xff]
    %v180 = vld [vmem:[#allocation5 + $0x3d0] sm:$0xff]
    %v181 = vld [vmem:[#allocation5 + $0x3d8] sm:$0xff]
    %v182 = vld [vmem:[#allocation5 + $0x3e0] sm:$0xff]
    %v183 = vld [vmem:[#allocation5 + $0x3e8] sm:$0xff]
    %v184 = vld [vmem:[#allocation5 + $0x3f0] sm:$0xff]
    %v185 = vld [vmem:[#allocation5 + $0x3f8] sm:$0xff]
    %v186 = vld [vmem:[#allocation7] sm:$0xff]
    %v188 = vlaneseq
    %v189 = vshrl.u32 %v188, 7
    %v190 = vsub.s32 0, %v189
    %v191 = vrot.slane %v186, %v190
    %v192 = vlaneseq
    %v193 = vshrl.u32 %v192, 7
    %v194 = vsub.s32 1, %v193
    %v195 = vrot.slane %v186, %v194
    %v196 = vlaneseq
    %v197 = vshrl.u32 %v196, 7
    %v198 = vsub.s32 2, %v197
    %v199 = vrot.slane %v186, %v198
    %v200 = vlaneseq
    %v201 = vshrl.u32 %v200, 7
    %v202 = vsub.s32 3, %v201
    %v203 = vrot.slane %v186, %v202
    %v204 = vlaneseq
    %v205 = vshrl.u32 %v204, 7
    %v206 = vsub.s32 4, %v205
    %v207 = vrot.slane %v186, %v206
    %v208 = vlaneseq
    %v209 = vshrl.u32 %v208, 7
    %v210 = vsub.s32 5, %v209
    %v211 = vrot.slane %v186, %v210
    %v212 = vlaneseq
    %v213 = vshrl.u32 %v212, 7
    %v214 = vsub.s32 6, %v213
    %v215 = vrot.slane %v186, %v214
    %v216 = vlaneseq
    %v217 = vshrl.u32 %v216, 7
    %v218 = vsub.s32 7, %v217
    %v219 = vrot.slane %v186, %v218
    %v356 = vunpack.c.l.b16 %v58
    %v357 = vunpack.c.h.b16 %v58
    %v358 = vunpack.c.l.b16 %v59
    %v359 = vunpack.c.h.b16 %v59
    %v360 = vunpack.c.l.b16 %v60
    %v361 = vunpack.c.h.b16 %v60
    %v362 = vunpack.c.l.b16 %v61
    %v363 = vunpack.c.h.b16 %v61
    %v364 = vunpack.c.l.b16 %v62
    %v365 = vunpack.c.h.b16 %v62
    %v366 = vunpack.c.l.b16 %v63
    %v367 = vunpack.c.h.b16 %v63
    %v368 = vunpack.c.l.b16 %v64
    %v369 = vunpack.c.h.b16 %v64
    %v370 = vunpack.c.l.b16 %v65
    %v371 = vunpack.c.h.b16 %v65
    %v372 = vunpack.c.l.b16 %v66
    %v373 = vunpack.c.h.b16 %v66
    %v374 = vunpack.c.l.b16 %v67
    %v375 = vunpack.c.h.b16 %v67
    %v376 = vunpack.c.l.b16 %v68
    %v377 = vunpack.c.h.b16 %v68
    %v378 = vunpack.c.l.b16 %v69
    %v379 = vunpack.c.h.b16 %v69
    %v380 = vunpack.c.l.b16 %v70
    %v381 = vunpack.c.h.b16 %v70
    %v382 = vunpack.c.l.b16 %v71
    %v383 = vunpack.c.h.b16 %v71
    %v384 = vunpack.c.l.b16 %v72
    %v385 = vunpack.c.h.b16 %v72
    %v386 = vunpack.c.l.b16 %v73
    %v387 = vunpack.c.h.b16 %v73
    %v388 = vunpack.c.l.b16 %v74
    %v389 = vunpack.c.h.b16 %v74
    %v390 = vunpack.c.l.b16 %v75
    %v391 = vunpack.c.h.b16 %v75
    %v392 = vunpack.c.l.b16 %v76
    %v393 = vunpack.c.h.b16 %v76
    %v394 = vunpack.c.l.b16 %v77
    %v395 = vunpack.c.h.b16 %v77
    %v396 = vunpack.c.l.b16 %v78
    %v397 = vunpack.c.h.b16 %v78
    %v398 = vunpack.c.l.b16 %v79
    %v399 = vunpack.c.h.b16 %v79
    %v400 = vunpack.c.l.b16 %v80
    %v401 = vunpack.c.h.b16 %v80
    %v402 = vunpack.c.l.b16 %v81
    %v403 = vunpack.c.h.b16 %v81
    %v404 = vunpack.c.l.b16 %v82
    %v405 = vunpack.c.h.b16 %v82
    %v406 = vunpack.c.l.b16 %v83
    %v407 = vunpack.c.h.b16 %v83
    %v408 = vunpack.c.l.b16 %v84
    %v409 = vunpack.c.h.b16 %v84
    %v410 = vunpack.c.l.b16 %v85
    %v411 = vunpack.c.h.b16 %v85
    %v412 = vunpack.c.l.b16 %v86
    %v413 = vunpack.c.h.b16 %v86
    %v414 = vunpack.c.l.b16 %v87
    %v415 = vunpack.c.h.b16 %v87
    %v416 = vunpack.c.l.b16 %v88
    %v417 = vunpack.c.h.b16 %v88
    %v418 = vunpack.c.l.b16 %v89
    %v419 = vunpack.c.h.b16 %v89
    %v420 = vunpack.c.l.b16 %v90
    %v421 = vunpack.c.h.b16 %v90
    %v422 = vunpack.c.l.b16 %v91
    %v423 = vunpack.c.h.b16 %v91
    %v424 = vunpack.c.l.b16 %v92
    %v425 = vunpack.c.h.b16 %v92
    %v426 = vunpack.c.l.b16 %v93
    %v427 = vunpack.c.h.b16 %v93
    %v428 = vunpack.c.l.b16 %v94
    %v429 = vunpack.c.h.b16 %v94
    %v430 = vunpack.c.l.b16 %v95
    %v431 = vunpack.c.h.b16 %v95
    %v432 = vunpack.c.l.b16 %v96
    %v433 = vunpack.c.h.b16 %v96
    %v434 = vunpack.c.l.b16 %v97
    %v435 = vunpack.c.h.b16 %v97
    %v436 = vunpack.c.l.b16 %v98
    %v437 = vunpack.c.h.b16 %v98
    %v438 = vunpack.c.l.b16 %v99
    %v439 = vunpack.c.h.b16 %v99
    %v440 = vunpack.c.l.b16 %v100
    %v441 = vunpack.c.h.b16 %v100
    %v442 = vunpack.c.l.b16 %v101
    %v443 = vunpack.c.h.b16 %v101
    %v444 = vunpack.c.l.b16 %v102
    %v445 = vunpack.c.h.b16 %v102
    %v446 = vunpack.c.l.b16 %v103
    %v447 = vunpack.c.h.b16 %v103
    %v448 = vunpack.c.l.b16 %v104
    %v449 = vunpack.c.h.b16 %v104
    %v450 = vunpack.c.l.b16 %v105
    %v451 = vunpack.c.h.b16 %v105
    %v452 = vunpack.c.l.b16 %v106
    %v453 = vunpack.c.h.b16 %v106
    %v454 = vunpack.c.l.b16 %v107
    %v455 = vunpack.c.h.b16 %v107
    %v456 = vunpack.c.l.b16 %v108
    %v457 = vunpack.c.h.b16 %v108
    %v458 = vunpack.c.l.b16 %v109
    %v459 = vunpack.c.h.b16 %v109
    %v460 = vunpack.c.l.b16 %v110
    %v461 = vunpack.c.h.b16 %v110
    %v462 = vunpack.c.l.b16 %v111
    %v463 = vunpack.c.h.b16 %v111
    %v464 = vunpack.c.l.b16 %v112
    %v465 = vunpack.c.h.b16 %v112
    %v466 = vunpack.c.l.b16 %v113
    %v467 = vunpack.c.h.b16 %v113
    %v468 = vunpack.c.l.b16 %v114
    %v469 = vunpack.c.h.b16 %v114
    %v470 = vunpack.c.l.b16 %v115
    %v471 = vunpack.c.h.b16 %v115
    %v472 = vunpack.c.l.b16 %v116
    %v473 = vunpack.c.h.b16 %v116
    %v474 = vunpack.c.l.b16 %v117
    %v475 = vunpack.c.h.b16 %v117
    %v476 = vunpack.c.l.b16 %v118
    %v477 = vunpack.c.h.b16 %v118
    %v478 = vunpack.c.l.b16 %v119
    %v479 = vunpack.c.h.b16 %v119
    %v480 = vunpack.c.l.b16 %v120
    %v481 = vunpack.c.h.b16 %v120
    %v482 = vunpack.c.l.b16 %v121
    %v483 = vunpack.c.h.b16 %v121
    %v484 = vunpack.c.l.b16 %v122
    %v485 = vunpack.c.h.b16 %v122
    %v486 = vunpack.c.l.b16 %v123
    %v487 = vunpack.c.h.b16 %v123
    %v488 = vunpack.c.l.b16 %v124
    %v489 = vunpack.c.h.b16 %v124
    %v490 = vunpack.c.l.b16 %v125
    %v491 = vunpack.c.h.b16 %v125
    %v492 = vunpack.c.l.b16 %v126
    %v493 = vunpack.c.h.b16 %v126
    %v494 = vunpack.c.l.b16 %v127
    %v495 = vunpack.c.h.b16 %v127
    %v496 = vunpack.c.l.b16 %v128
    %v497 = vunpack.c.h.b16 %v128
    %v498 = vunpack.c.l.b16 %v129
    %v499 = vunpack.c.h.b16 %v129
    %v500 = vunpack.c.l.b16 %v130
    %v501 = vunpack.c.h.b16 %v130
    %v502 = vunpack.c.l.b16 %v131
    %v503 = vunpack.c.h.b16 %v131
    %v504 = vunpack.c.l.b16 %v132
    %v505 = vunpack.c.h.b16 %v132
    %v506 = vunpack.c.l.b16 %v133
    %v507 = vunpack.c.h.b16 %v133
    %v508 = vunpack.c.l.b16 %v134
    %v509 = vunpack.c.h.b16 %v134
    %v510 = vunpack.c.l.b16 %v135
    %v511 = vunpack.c.h.b16 %v135
    %v512 = vunpack.c.l.b16 %v136
    %v513 = vunpack.c.h.b16 %v136
    %v514 = vunpack.c.l.b16 %v137
    %v515 = vunpack.c.h.b16 %v137
    %v516 = vunpack.c.l.b16 %v138
    %v517 = vunpack.c.h.b16 %v138
    %v518 = vunpack.c.l.b16 %v139
    %v519 = vunpack.c.h.b16 %v139
    %v520 = vunpack.c.l.b16 %v140
    %v521 = vunpack.c.h.b16 %v140
    %v522 = vunpack.c.l.b16 %v141
    %v523 = vunpack.c.h.b16 %v141
    %v524 = vunpack.c.l.b16 %v142
    %v525 = vunpack.c.h.b16 %v142
    %v526 = vunpack.c.l.b16 %v143
    %v527 = vunpack.c.h.b16 %v143
    %v528 = vunpack.c.l.b16 %v144
    %v529 = vunpack.c.h.b16 %v144
    %v530 = vunpack.c.l.b16 %v145
    %v531 = vunpack.c.h.b16 %v145
    %v532 = vunpack.c.l.b16 %v146
    %v533 = vunpack.c.h.b16 %v146
    %v534 = vunpack.c.l.b16 %v147
    %v535 = vunpack.c.h.b16 %v147
    %v536 = vunpack.c.l.b16 %v148
    %v537 = vunpack.c.h.b16 %v148
    %v538 = vunpack.c.l.b16 %v149
    %v539 = vunpack.c.h.b16 %v149
    %v540 = vunpack.c.l.b16 %v150
    %v541 = vunpack.c.h.b16 %v150
    %v542 = vunpack.c.l.b16 %v151
    %v543 = vunpack.c.h.b16 %v151
    %v544 = vunpack.c.l.b16 %v152
    %v545 = vunpack.c.h.b16 %v152
    %v546 = vunpack.c.l.b16 %v153
    %v547 = vunpack.c.h.b16 %v153
    %v548 = vunpack.c.l.b16 %v154
    %v549 = vunpack.c.h.b16 %v154
    %v550 = vunpack.c.l.b16 %v155
    %v551 = vunpack.c.h.b16 %v155
    %v552 = vunpack.c.l.b16 %v156
    %v553 = vunpack.c.h.b16 %v156
    %v554 = vunpack.c.l.b16 %v157
    %v555 = vunpack.c.h.b16 %v157
    %v556 = vunpack.c.l.b16 %v158
    %v557 = vunpack.c.h.b16 %v158
    %v558 = vunpack.c.l.b16 %v159
    %v559 = vunpack.c.h.b16 %v159
    %v560 = vunpack.c.l.b16 %v160
    %v561 = vunpack.c.h.b16 %v160
    %v562 = vunpack.c.l.b16 %v161
    %v563 = vunpack.c.h.b16 %v161
    %v564 = vunpack.c.l.b16 %v162
    %v565 = vunpack.c.h.b16 %v162
    %v566 = vunpack.c.l.b16 %v163
    %v567 = vunpack.c.h.b16 %v163
    %v568 = vunpack.c.l.b16 %v164
    %v569 = vunpack.c.h.b16 %v164
    %v570 = vunpack.c.l.b16 %v165
    %v571 = vunpack.c.h.b16 %v165
    %v572 = vunpack.c.l.b16 %v166
    %v573 = vunpack.c.h.b16 %v166
    %v574 = vunpack.c.l.b16 %v167
    %v575 = vunpack.c.h.b16 %v167
    %v576 = vunpack.c.l.b16 %v168
    %v577 = vunpack.c.h.b16 %v168
    %v578 = vunpack.c.l.b16 %v169
    %v579 = vunpack.c.h.b16 %v169
    %v580 = vunpack.c.l.b16 %v170
    %v581 = vunpack.c.h.b16 %v170
    %v582 = vunpack.c.l.b16 %v171
    %v583 = vunpack.c.h.b16 %v171
    %v584 = vunpack.c.l.b16 %v172
    %v585 = vunpack.c.h.b16 %v172
    %v586 = vunpack.c.l.b16 %v173
    %v587 = vunpack.c.h.b16 %v173
    %v588 = vunpack.c.l.b16 %v174
    %v589 = vunpack.c.h.b16 %v174
    %v590 = vunpack.c.l.b16 %v175
    %v591 = vunpack.c.h.b16 %v175
    %v592 = vunpack.c.l.b16 %v176
    %v593 = vunpack.c.h.b16 %v176
    %v594 = vunpack.c.l.b16 %v177
    %v595 = vunpack.c.h.b16 %v177
    %v596 = vunpack.c.l.b16 %v178
    %v597 = vunpack.c.h.b16 %v178
    %v598 = vunpack.c.l.b16 %v179
    %v599 = vunpack.c.h.b16 %v179
    %v600 = vunpack.c.l.b16 %v180
    %v601 = vunpack.c.h.b16 %v180
    %v602 = vunpack.c.l.b16 %v181
    %v603 = vunpack.c.h.b16 %v181
    %v604 = vunpack.c.l.b16 %v182
    %v605 = vunpack.c.h.b16 %v182
    %v606 = vunpack.c.l.b16 %v183
    %v607 = vunpack.c.h.b16 %v183
    %v608 = vunpack.c.l.b16 %v184
    %v609 = vunpack.c.h.b16 %v184
    %v610 = vunpack.c.l.b16 %v185
    %v611 = vunpack.c.h.b16 %v185
    %v612 = vpack.c.b16 %v364, %v356
    %v613 = vpack.c.b16 %v365, %v357
    %v614 = vpack.c.b16 %v366, %v358
    %v615 = vpack.c.b16 %v367, %v359
    %v616 = vpack.c.b16 %v368, %v360
    %v617 = vpack.c.b16 %v369, %v361
    %v618 = vpack.c.b16 %v370, %v362
    %v619 = vpack.c.b16 %v371, %v363
    %v620 = vpack.c.b16 %v380, %v372
    %v621 = vpack.c.b16 %v381, %v373
    %v622 = vpack.c.b16 %v382, %v374
    %v623 = vpack.c.b16 %v383, %v375
    %v624 = vpack.c.b16 %v384, %v376
    %v625 = vpack.c.b16 %v385, %v377
    %v626 = vpack.c.b16 %v386, %v378
    %v627 = vpack.c.b16 %v387, %v379
    %v628 = vpack.c.b16 %v396, %v388
    %v629 = vpack.c.b16 %v397, %v389
    %v630 = vpack.c.b16 %v398, %v390
    %v631 = vpack.c.b16 %v399, %v391
    %v632 = vpack.c.b16 %v400, %v392
    %v633 = vpack.c.b16 %v401, %v393
    %v634 = vpack.c.b16 %v402, %v394
    %v635 = vpack.c.b16 %v403, %v395
    %v636 = vpack.c.b16 %v412, %v404
    %v637 = vpack.c.b16 %v413, %v405
    %v638 = vpack.c.b16 %v414, %v406
    %v639 = vpack.c.b16 %v415, %v407
    %v640 = vpack.c.b16 %v416, %v408
    %v641 = vpack.c.b16 %v417, %v409
    %v642 = vpack.c.b16 %v418, %v410
    %v643 = vpack.c.b16 %v419, %v411
    %v644 = vpack.c.b16 %v428, %v420
    %v645 = vpack.c.b16 %v429, %v421
    %v646 = vpack.c.b16 %v430, %v422
    %v647 = vpack.c.b16 %v431, %v423
    %v648 = vpack.c.b16 %v432, %v424
    %v649 = vpack.c.b16 %v433, %v425
    %v650 = vpack.c.b16 %v434, %v426
    %v651 = vpack.c.b16 %v435, %v427
    %v652 = vpack.c.b16 %v444, %v436
    %v653 = vpack.c.b16 %v445, %v437
    %v654 = vpack.c.b16 %v446, %v438
    %v655 = vpack.c.b16 %v447, %v439
    %v656 = vpack.c.b16 %v448, %v440
    %v657 = vpack.c.b16 %v449, %v441
    %v658 = vpack.c.b16 %v450, %v442
    %v659 = vpack.c.b16 %v451, %v443
    %v660 = vpack.c.b16 %v460, %v452
    %v661 = vpack.c.b16 %v461, %v453
    %v662 = vpack.c.b16 %v462, %v454
    %v663 = vpack.c.b16 %v463, %v455
    %v664 = vpack.c.b16 %v464, %v456
    %v665 = vpack.c.b16 %v465, %v457
    %v666 = vpack.c.b16 %v466, %v458
    %v667 = vpack.c.b16 %v467, %v459
    %v668 = vpack.c.b16 %v476, %v468
    %v669 = vpack.c.b16 %v477, %v469
    %v670 = vpack.c.b16 %v478, %v470
    %v671 = vpack.c.b16 %v479, %v471
    %v672 = vpack.c.b16 %v480, %v472
    %v673 = vpack.c.b16 %v481, %v473
    %v674 = vpack.c.b16 %v482, %v474
    %v675 = vpack.c.b16 %v483, %v475
    %v676 = vpack.c.b16 %v492, %v484
    %v677 = vpack.c.b16 %v493, %v485
    %v678 = vpack.c.b16 %v494, %v486
    %v679 = vpack.c.b16 %v495, %v487
    %v680 = vpack.c.b16 %v496, %v488
    %v681 = vpack.c.b16 %v497, %v489
    %v682 = vpack.c.b16 %v498, %v490
    %v683 = vpack.c.b16 %v499, %v491
    %v684 = vpack.c.b16 %v508, %v500
    %v685 = vpack.c.b16 %v509, %v501
    %v686 = vpack.c.b16 %v510, %v502
    %v687 = vpack.c.b16 %v511, %v503
    %v688 = vpack.c.b16 %v512, %v504
    %v689 = vpack.c.b16 %v513, %v505
    %v690 = vpack.c.b16 %v514, %v506
    %v691 = vpack.c.b16 %v515, %v507
    %v692 = vpack.c.b16 %v524, %v516
    %v693 = vpack.c.b16 %v525, %v517
    %v694 = vpack.c.b16 %v526, %v518
    %v695 = vpack.c.b16 %v527, %v519
    %v696 = vpack.c.b16 %v528, %v520
    %v697 = vpack.c.b16 %v529, %v521
    %v698 = vpack.c.b16 %v530, %v522
    %v699 = vpack.c.b16 %v531, %v523
    %v700 = vpack.c.b16 %v540, %v532
    %v701 = vpack.c.b16 %v541, %v533
    %v702 = vpack.c.b16 %v542, %v534
    %v703 = vpack.c.b16 %v543, %v535
    %v704 = vpack.c.b16 %v544, %v536
    %v705 = vpack.c.b16 %v545, %v537
    %v706 = vpack.c.b16 %v546, %v538
    %v707 = vpack.c.b16 %v547, %v539
    %v708 = vpack.c.b16 %v556, %v548
    %v709 = vpack.c.b16 %v557, %v549
    %v710 = vpack.c.b16 %v558, %v550
    %v711 = vpack.c.b16 %v559, %v551
    %v712 = vpack.c.b16 %v560, %v552
    %v713 = vpack.c.b16 %v561, %v553
    %v714 = vpack.c.b16 %v562, %v554
    %v715 = vpack.c.b16 %v563, %v555
    %v716 = vpack.c.b16 %v572, %v564
    %v717 = vpack.c.b16 %v573, %v565
    %v718 = vpack.c.b16 %v574, %v566
    %v719 = vpack.c.b16 %v575, %v567
    %v720 = vpack.c.b16 %v576, %v568
    %v721 = vpack.c.b16 %v577, %v569
    %v722 = vpack.c.b16 %v578, %v570
    %v723 = vpack.c.b16 %v579, %v571
    %v724 = vpack.c.b16 %v588, %v580
    %v725 = vpack.c.b16 %v589, %v581
    %v726 = vpack.c.b16 %v590, %v582
    %v727 = vpack.c.b16 %v591, %v583
    %v728 = vpack.c.b16 %v592, %v584
    %v729 = vpack.c.b16 %v593, %v585
    %v730 = vpack.c.b16 %v594, %v586
    %v731 = vpack.c.b16 %v595, %v587
    %v732 = vpack.c.b16 %v604, %v596
    %v733 = vpack.c.b16 %v605, %v597
    %v734 = vpack.c.b16 %v606, %v598
    %v735 = vpack.c.b16 %v607, %v599
    %v736 = vpack.c.b16 %v608, %v600
    %v737 = vpack.c.b16 %v609, %v601
    %v738 = vpack.c.b16 %v610, %v602
    %v739 = vpack.c.b16 %v611, %v603
    %868 = vmatprep.subr.bf16.mxu0 %v669
    %869 = vmatpush1.bf16.msra.mxu0 %v668
    %870 = vmatprep.subr.bf16.mxu0 %v661
    %871 = vmatpush1.bf16.msra.mxu0 %v660
    %872 = vmatprep.subr.bf16.mxu0 %v653
    %873 = vmatpush1.bf16.msra.mxu0 %v652
    %874 = vmatprep.subr.bf16.mxu0 %v645
    %875 = vmatpush1.bf16.msra.mxu0 %v644
    %876 = vmatprep.subr.bf16.mxu0 %v637
    %877 = vmatpush1.bf16.msra.mxu0 %v636
    %878 = vmatprep.subr.bf16.mxu0 %v629
    %879 = vmatpush1.bf16.msra.mxu0 %v628
    %880 = vmatprep.subr.bf16.mxu0 %v621
    %881 = vmatpush1.bf16.msra.mxu0 %v620
    %882 = vmatprep.subr.bf16.mxu0 %v613
    %883 = vmatpush1.bf16.msra.mxu0 %v612
    %884 = vmatprep.subr.bf16.mxu0 %v733
    %885 = vmatpush2.bf16.msra.mxu0 %v732
    %886 = vmatprep.subr.bf16.mxu0 %v725
    %887 = vmatpush2.bf16.msra.mxu0 %v724
    %888 = vmatprep.subr.bf16.mxu0 %v717
    %889 = vmatpush2.bf16.msra.mxu0 %v716
    %890 = vmatprep.subr.bf16.mxu0 %v709
    %891 = vmatpush2.bf16.msra.mxu0 %v708
    %892 = vmatprep.subr.bf16.mxu0 %v701
    %893 = vmatpush2.bf16.msra.mxu0 %v700
    %894 = vmatprep.subr.bf16.mxu0 %v693
    %895 = vmatpush2.bf16.msra.mxu0 %v692
    %896 = vmatprep.subr.bf16.mxu0 %v685
    %897 = vmatpush2.bf16.msra.mxu0 %v684
    %898 = vmatprep.subr.bf16.mxu0 %v677
    %899 = vmatpush2.bf16.msra.mxu0 %v676
    %900 = vmatprep.mubr.bf16.mxu0 %v57
    %901 = vmatmul.mubr.bf16.gmra.mxu0 %v56
    %v902 = vpop.f32.mrf.mxu0
    %v903 = vadd.f32 %v191, %v902
    %v904 = vpop.f32.mrf.mxu0
    %v905 = vadd.f32 %v195, %v904
    %v906 = vpop.f32.mrf.mxu0
    %v907 = vpop.f32.mrf.mxu0
    %908 = vdwg.mxu0
    %909 = vmatprep.subr.bf16.mxu0 %v671
    %910 = vmatpush1.bf16.msra.mxu0 %v670
    %911 = vmatprep.subr.bf16.mxu0 %v663
    %912 = vmatpush1.bf16.msra.mxu0 %v662
    %913 = vmatprep.subr.bf16.mxu0 %v655
    %914 = vmatpush1.bf16.msra.mxu0 %v654
    %915 = vmatprep.subr.bf16.mxu0 %v647
    %916 = vmatpush1.bf16.msra.mxu0 %v646
    %917 = vmatprep.subr.bf16.mxu0 %v639
    %918 = vmatpush1.bf16.msra.mxu0 %v638
    %919 = vmatprep.subr.bf16.mxu0 %v631
    %920 = vmatpush1.bf16.msra.mxu0 %v630
    %921 = vmatprep.subr.bf16.mxu0 %v623
    %922 = vmatpush1.bf16.msra.mxu0 %v622
    %923 = vmatprep.subr.bf16.mxu0 %v615
    %924 = vmatpush1.bf16.msra.mxu0 %v614
    %925 = vmatprep.subr.bf16.mxu0 %v735
    %926 = vmatpush2.bf16.msra.mxu0 %v734
    %927 = vmatprep.subr.bf16.mxu0 %v727
    %928 = vmatpush2.bf16.msra.mxu0 %v726
    %929 = vmatprep.subr.bf16.mxu0 %v719
    %930 = vmatpush2.bf16.msra.mxu0 %v718
    %931 = vmatprep.subr.bf16.mxu0 %v711
    %932 = vmatpush2.bf16.msra.mxu0 %v710
    %933 = vmatprep.subr.bf16.mxu0 %v703
    %934 = vmatpush2.bf16.msra.mxu0 %v702
    %935 = vmatprep.subr.bf16.mxu0 %v695
    %936 = vmatpush2.bf16.msra.mxu0 %v694
    %937 = vmatprep.subr.bf16.mxu0 %v687
    %938 = vmatpush2.bf16.msra.mxu0 %v686
    %939 = vmatprep.subr.bf16.mxu0 %v679
    %940 = vmatpush2.bf16.msra.mxu0 %v678
    %941 = vmatprep.mubr.bf16.mxu0 %v57
    %942 = vmatmul.mubr.bf16.gmra.mxu0 %v56
    %v943 = vpop.f32.mrf.mxu0
    %v944 = vadd.f32 %v199, %v943
    %v945 = vpop.f32.mrf.mxu0
    %v946 = vadd.f32 %v203, %v945
    %v947 = vpop.f32.mrf.mxu0
    %v948 = vpop.f32.mrf.mxu0
    %949 = vdwg.mxu0
    %950 = vmatprep.subr.bf16.mxu0 %v673
    %951 = vmatpush1.bf16.msra.mxu0 %v672
    %952 = vmatprep.subr.bf16.mxu0 %v665
    %953 = vmatpush1.bf16.msra.mxu0 %v664
    %954 = vmatprep.subr.bf16.mxu0 %v657
    %955 = vmatpush1.bf16.msra.mxu0 %v656
    %956 = vmatprep.subr.bf16.mxu0 %v649
    %957 = vmatpush1.bf16.msra.mxu0 %v648
    %958 = vmatprep.subr.bf16.mxu0 %v641
    %959 = vmatpush1.bf16.msra.mxu0 %v640
    %960 = vmatprep.subr.bf16.mxu0 %v633
    %961 = vmatpush1.bf16.msra.mxu0 %v632
    %962 = vmatprep.subr.bf16.mxu0 %v625
    %963 = vmatpush1.bf16.msra.mxu0 %v624
    %964 = vmatprep.subr.bf16.mxu0 %v617
    %965 = vmatpush1.bf16.msra.mxu0 %v616
    %966 = vmatprep.subr.bf16.mxu0 %v737
    %967 = vmatpush2.bf16.msra.mxu0 %v736
    %968 = vmatprep.subr.bf16.mxu0 %v729
    %969 = vmatpush2.bf16.msra.mxu0 %v728
    %970 = vmatprep.subr.bf16.mxu0 %v721
    %971 = vmatpush2.bf16.msra.mxu0 %v720
    %972 = vmatprep.subr.bf16.mxu0 %v713
    %973 = vmatpush2.bf16.msra.mxu0 %v712
    %974 = vmatprep.subr.bf16.mxu0 %v705
    %975 = vmatpush2.bf16.msra.mxu0 %v704
    %976 = vmatprep.subr.bf16.mxu0 %v697
    %977 = vmatpush2.bf16.msra.mxu0 %v696
    %978 = vmatprep.subr.bf16.mxu0 %v689
    %979 = vmatpush2.bf16.msra.mxu0 %v688
    %980 = vmatprep.subr.bf16.mxu0 %v681
    %981 = vmatpush2.bf16.msra.mxu0 %v680
    %982 = vmatprep.mubr.bf16.mxu0 %v57
    %983 = vmatmul.mubr.bf16.gmra.mxu0 %v56
    %v984 = vpop.f32.mrf.mxu0
    %v985 = vadd.f32 %v207, %v984
    %v986 = vpop.f32.mrf.mxu0
    %v987 = vadd.f32 %v211, %v986
    %v988 = vpop.f32.mrf.mxu0
    %v989 = vpop.f32.mrf.mxu0
    %990 = vdwg.mxu0
    %991 = vmatprep.subr.bf16.mxu0 %v675
    %992 = vmatpush1.bf16.msra.mxu0 %v674
    %993 = vmatprep.subr.bf16.mxu0 %v667
    %994 = vmatpush1.bf16.msra.mxu0 %v666
    %995 = vmatprep.subr.bf16.mxu0 %v659
    %996 = vmatpush1.bf16.msra.mxu0 %v658
    %997 = vmatprep.subr.bf16.mxu0 %v651
    %998 = vmatpush1.bf16.msra.mxu0 %v650
    %999 = vmatprep.subr.bf16.mxu0 %v643
    %1000 = vmatpush1.bf16.msra.mxu0 %v642
    %1001 = vmatprep.subr.bf16.mxu0 %v635
    %1002 = vmatpush1.bf16.msra.mxu0 %v634
    %1003 = vmatprep.subr.bf16.mxu0 %v627
    %1004 = vmatpush1.bf16.msra.mxu0 %v626
    %1005 = vmatprep.subr.bf16.mxu0 %v619
    %1006 = vmatpush1.bf16.msra.mxu0 %v618
    %1007 = vmatprep.subr.bf16.mxu0 %v739
    %1008 = vmatpush2.bf16.msra.mxu0 %v738
    %1009 = vmatprep.subr.bf16.mxu0 %v731
    %1010 = vmatpush2.bf16.msra.mxu0 %v730
    %1011 = vmatprep.subr.bf16.mxu0 %v723
    %1012 = vmatpush2.bf16.msra.mxu0 %v722
    %1013 = vmatprep.subr.bf16.mxu0 %v715
    %1014 = vmatpush2.bf16.msra.mxu0 %v714
    %1015 = vmatprep.subr.bf16.mxu0 %v707
    %1016 = vmatpush2.bf16.msra.mxu0 %v706
    %1017 = vmatprep.subr.bf16.mxu0 %v699
    %1018 = vmatpush2.bf16.msra.mxu0 %v698
    %1019 = vmatprep.subr.bf16.mxu0 %v691
    %1020 = vmatpush2.bf16.msra.mxu0 %v690
    %1021 = vmatprep.subr.bf16.mxu0 %v683
    %1022 = vmatpush2.bf16.msra.mxu0 %v682
    %1023 = vmatprep.mubr.bf16.mxu0 %v57
    %1024 = vmatmul.mubr.bf16.gmra.mxu0 %v56
    %v1025 = vpop.f32.mrf.mxu0
    %v1026 = vadd.f32 %v215, %v1025
    %v1027 = vpop.f32.mrf.mxu0
    %v1028 = vadd.f32 %v219, %v1027
    %v1029 = vpop.f32.mrf.mxu0
    %v1030 = vpop.f32.mrf.mxu0
    %1031 = vdwg.mxu0
    %v1032 = vtanh.pop %v903
    %v1033 = vtanh.pop %v905
    %v1034 = vtanh.pop %v944
    %v1035 = vtanh.pop %v946
    %v1036 = vtanh.pop %v985
    %v1037 = vtanh.pop %v987
    %v1038 = vtanh.pop %v1026
    %v1039 = vtanh.pop %v1028
    %1040 = vst [vmem:[#allocation8] sm:$0xff] %v1032
    %1041 = vst [vmem:[#allocation8 + $0x8] sm:$0xff] %v1033
    %1042 = vst [vmem:[#allocation8 + $0x10] sm:$0xff] %v1034
    %1043 = vst [vmem:[#allocation8 + $0x18] sm:$0xff] %v1035
    %1044 = vst [vmem:[#allocation8 + $0x20] sm:$0xff] %v1036
    %1045 = vst [vmem:[#allocation8 + $0x28] sm:$0xff] %v1037
    %1046 = vst [vmem:[#allocation8 + $0x30] sm:$0xff] %v1038
    %1047 = vst [vmem:[#allocation8 + $0x38] sm:$0xff] %v1039
    // Predicated region
    $region26: #{tpu_custom_call.1} parent=1 // pred_check
      _
    $region27: #{tpu_custom_call.1} parent=1 // pred_check_branch
      %1049 = sbr.rel (0) target = $region29
    $region28: #{tpu_custom_call.1} parent=1 // pred_region
      %s1051 = ssub.s32 1024, 1024
      %1052 = vsyncadd [#allocation4], %s1051
      %s1054 = sshll.u32 [#allocation8], 4
      %s1055 = int_to_ptr.vmem [resolvable:$true] %s1054
      %1057 = dma.vmem_to_hbm [thread:$0]  %s1055, 1024, %s3, [#allocation4]
    $region29: #{tpu_custom_call.1} parent=1 // pred_fallthru
      _
    // Predicated region
    $region30: #{tpu_custom_call.1} parent=1 // pred_check
      _
    $region31: #{tpu_custom_call.1} parent=1 // pred_check_branch
      %1059 = sbr.rel (0) target = $region33
    $region32: #{tpu_custom_call.1} parent=1 // pred_region
      %1060 = dma.done [#allocation4], 1024
    $region33: #{tpu_custom_call.1} parent=1 // pred_fallthru
      _
    %1061 = vsyncpa [#allocation3], 1
    %1062 = vsyncpa [#allocation6], 1
    %1063 = vsyncpa [#allocation4], 1

</llo_original>
